<compile_context>
chip_gen: v7x
topology: tpu7x:2x2x1
jax: 0.10.0
libtpu: 0.0.40
codegen_flags: <defaults>
</compile_context>

<pallas_src>
import jax
import jax.numpy as jnp
from jax.experimental import pallas as pl
from jax.experimental.pallas import tpu as pltpu


def _round_up(x, m):
    return ((x + m - 1) // m) * m


def _cdiv(a, b):
    return (a + b - 1) // b


def _chip_config():
    """Generation-aware tiling defaults (detected from device_kind)."""
    try:
        kind = jax.devices()[0].device_kind.lower()
    except Exception:  # pragma: no cover - detection is best-effort
        kind = ""
    if "v7" in kind or "7x" in kind:
        # 64 MiB VMEM per TensorCore, 2 TCs/chip: conservative budget and keep
        # the parallel token axis split into >= 2 tiles whenever M allows it.
        return dict(gen="v7x", vmem_limit=52 << 20, budget=34 << 20,
                    align=256, tm_bf16=512, tm_f32=512, min_m_tiles=2)
    if "v6" in kind:
        return dict(gen="v6e", vmem_limit=100 << 20, budget=80 << 20,
                    align=256, tm_bf16=1024, tm_f32=1024, min_m_tiles=1)
    if "v5p" in kind or "v4" in kind:
        return dict(gen="v5p", vmem_limit=100 << 20, budget=80 << 20,
                    align=128, tm_bf16=512, tm_f32=512, min_m_tiles=2)
    if "v5" in kind:
        return dict(gen="v5e", vmem_limit=100 << 20, budget=80 << 20,
                    align=128, tm_bf16=256, tm_f32=512, min_m_tiles=1)
    return dict(gen="unknown", vmem_limit=64 << 20, budget=44 << 20,
                align=128, tm_bf16=512, tm_f32=256, min_m_tiles=1)


def _est_streamed(tm, th, n_embd, x_bytes, w_bytes):
    """VMEM footprint estimate for the streamed (reduction-axis) plan."""
    return (2 * tm * n_embd * x_bytes          # x tile, double-buffered
            + 2 * tm * n_embd * x_bytes        # out tile, double-buffered
            + tm * n_embd * 4                  # f32 accumulator scratch
            + 2 * 2 * n_embd * th * w_bytes    # W1 + W2 slabs, double-buffered
            + tm * th * 4                      # f32 hidden intermediate
            + tm * th * w_bytes                # cast copy of h for 2nd matmul
            + 4 * (th + n_embd) * w_bytes      # biases (double-buffered, tiny)
            + (2 << 20))                       # Mosaic internal scratch margin


def _est_resident(tm, n_embd, hidden, x_bytes, w_bytes):
    """VMEM footprint estimate for the weights-resident plan (no reduction axis)."""
    return (2 * tm * n_embd * x_bytes
            + 2 * tm * n_embd * x_bytes
            + 2 * 2 * n_embd * hidden * w_bytes   # full W1 + W2, double-buffered
            + tm * hidden * 4
            + tm * hidden * w_bytes
            + 4 * (hidden + n_embd) * w_bytes
            + (2 << 20))


def _ffn_kernel_resident(x_ref, w1_ref, b1_ref, w2_ref, b2_ref, o_ref):
    # Whole hidden dim resident in VMEM: one shot, no scratch round-trip.
    h = jnp.dot(x_ref[...], w1_ref[...], preferred_element_type=jnp.float32)
    h = jnp.maximum(h + b1_ref[...], 0.0)
    y = jnp.dot(h.astype(w2_ref.dtype), w2_ref[...],
                preferred_element_type=jnp.float32)
    o_ref[...] = (y + b2_ref[...]).astype(o_ref.dtype)


def _ffn_kernel_streamed(x_ref, w1_ref, b1_ref, w2_ref, b2_ref, o_ref, acc_ref):
    # x_ref:  (tm, n_embd)
    # w1_ref: (n_embd, th), b1_ref: (1, th)
    # w2_ref: (th, n_embd), b2_ref: (1, n_embd)
    # acc_ref: (tm, n_embd) f32 scratch, resident across the hidden axis.
    j = pl.program_id(1)

    h = jnp.dot(x_ref[...], w1_ref[...], preferred_element_type=jnp.float32)
    h = jnp.maximum(h + b1_ref[...], 0.0)
    part = jnp.dot(h.astype(w2_ref.dtype), w2_ref[...],
                   preferred_element_type=jnp.float32)

    # First slab: direct store (saves a zero-init store + read of zeros).
    @pl.when(j == 0)
    def _first():
        acc_ref[...] = part

    @pl.when(j > 0)
    def _rest():
        acc_ref[...] += part

    @pl.when(j == pl.num_programs(1) - 1)
    def _finalize():
        o_ref[...] = (acc_ref[...] + b2_ref[...]).astype(o_ref.dtype)


def feed_forward(x, w1, b1, w2, b2, *, tm=None, th=None, vmem_limit_bytes=None):
    """x: [..., n_embd] -> [..., n_embd]  (same semantics as the torch module).

    w1: [n_embd, 4*n_embd], b1: [4*n_embd], w2: [4*n_embd, n_embd], b2: [n_embd]
    (weights stored [in, out], i.e. transposed vs torch's [out, in]).
    """
    orig_shape = x.shape
    n_embd = orig_shape[-1]
    hidden = w1.shape[-1]
    assert w1.shape == (n_embd, hidden)
    assert w2.shape == (hidden, n_embd)
    assert b1.shape == (hidden,)
    assert b2.shape == (n_embd,)

    cfg = _chip_config()
    if vmem_limit_bytes is None:
        vmem_limit_bytes = cfg["vmem_limit"]
    budget = min(cfg["budget"], int(vmem_limit_bytes * 0.8))

    x2d = x.reshape(-1, n_embd)
    M = x2d.shape[0]
    x_bytes = x2d.dtype.itemsize
    w_bytes = w1.dtype.itemsize

    # --- token tile selection -------------------------------------------------
    if tm is None:
        tm = cfg["tm_bf16"] if x_bytes <= 2 else cfg["tm_f32"]
    tm = max(8, _round_up(tm, 8))
    if tm >= cfg["align"]:
        tm = _round_up(tm, cfg["align"])            # MXU-friendly rounding
    if cfg["min_m_tiles"] >= 2 and M >= 2 * cfg["align"]:
        # Keep >= 2 token tiles so the 'parallel' axis spans both TensorCores.
        tm = min(tm, _round_up(_cdiv(M, 2), cfg["align"]))
    tm = min(tm, _round_up(M, 8))                   # never bigger than (padded) M

    # --- hidden tile / plan selection ------------------------------------------
    th_candidates = [t for t in (4096, 2048, 1024, 512, 256, 128) if hidden % t == 0]
    if not th_candidates:
        th_candidates = [hidden]                    # toy / non-128-aligned hidden

    resident = False
    if th is None:
        if _est_resident(tm, n_embd, hidden, x_bytes, w_bytes) <= budget:
            resident = True
            th = hidden
        else:
            # Shrink tm if even the smallest slab doesn't fit the budget.
            while tm > 128 and _est_streamed(tm, th_candidates[-1], n_embd,
                                             x_bytes, w_bytes) > budget:
                tm = max(128, _round_up(tm // 2, 8))
            th = th_candidates[-1]
            for cand in th_candidates:              # largest first
                if _est_streamed(tm, cand, n_embd, x_bytes, w_bytes) <= budget:
                    th = cand
                    break
    assert hidden % th == 0, "hidden tile must divide 4*n_embd"

    m_pad = _round_up(M, tm)
    if m_pad != M:
        x2d = jnp.pad(x2d, ((0, m_pad - M), (0, 0)))
    num_m_tiles = m_pad // tm

    b1_2d = b1.reshape(1, hidden)
    b2_2d = b2.reshape(1, n_embd)

    # --- cost estimate (advisory) ----------------------------------------------
    weight_passes = 1 if resident else num_m_tiles
    cost = pl.CostEstimate(
        flops=int(4 * M * hidden * n_embd),
        transcendentals=0,
        bytes_accessed=int((x2d.size + m_pad * n_embd) * x_bytes
                           + weight_passes * (w1.size + w2.size) * w_bytes),
    )

    if resident:
        kernel = _ffn_kernel_resident
        grid_spec = pltpu.PrefetchScalarGridSpec(
            num_scalar_prefetch=0,
            grid=(num_m_tiles,),
            in_specs=[
                pl.BlockSpec((tm, n_embd), lambda i: (i, 0)),      # x tile
                pl.BlockSpec((n_embd, hidden), lambda i: (0, 0)),  # W1 (resident)
                pl.BlockSpec((1, hidden), lambda i: (0, 0)),       # b1
                pl.BlockSpec((hidden, n_embd), lambda i: (0, 0)),  # W2 (resident)
                pl.BlockSpec((1, n_embd), lambda i: (0, 0)),       # b2
            ],
            out_specs=pl.BlockSpec((tm, n_embd), lambda i: (i, 0)),
        )
        dims = ("parallel",)
    else:
        kernel = _ffn_kernel_streamed
        grid_spec = pltpu.PrefetchScalarGridSpec(
            num_scalar_prefetch=0,
            grid=(num_m_tiles, hidden // th),
            in_specs=[
                pl.BlockSpec((tm, n_embd), lambda i, j: (i, 0)),   # x tile
                pl.BlockSpec((n_embd, th), lambda i, j: (0, j)),   # W1 slab
                pl.BlockSpec((1, th), lambda i, j: (0, j)),        # b1 slab
                pl.BlockSpec((th, n_embd), lambda i, j: (j, 0)),   # W2 slab
                pl.BlockSpec((1, n_embd), lambda i, j: (0, 0)),    # b2
            ],
            out_specs=pl.BlockSpec((tm, n_embd), lambda i, j: (i, 0)),
            scratch_shapes=[pltpu.VMEM((tm, n_embd), jnp.float32)],
        )
        dims = ("parallel", "arbitrary")

    out = pl.pallas_call(
        kernel,
        out_shape=jax.ShapeDtypeStruct((m_pad, n_embd), x.dtype),
        grid_spec=grid_spec,
        compiler_params=pltpu.CompilerParams(
            dimension_semantics=dims,
            vmem_limit_bytes=int(vmem_limit_bytes),
        ),
        cost_estimate=cost,
    )(x2d, w1, b1_2d, w2, b2_2d)

    if m_pad != M:
        out = out[:M]
    return out.reshape(orig_shape)


if __name__ == "__main__":
    def ref_ffn(x, w1, b1, w2, b2):
        xf = x.astype(jnp.float32)
        return (jnp.maximum(xf @ w1.astype(jnp.float32) + b1.astype(jnp.float32), 0.0)
                @ w2.astype(jnp.float32) + b2.astype(jnp.float32))

    def make_inputs(key, B, T, n_embd, dtype=jnp.float32):
        hidden = 4 * n_embd
        kx, kw1, kb1, kw2, kb2 = jax.random.split(key, 5)
        x = jax.random.normal(kx, (B, T, n_embd), dtype=dtype)
        # Weights stored [in, out] (transposed vs torch's [out, in]).
        w1 = jax.random.normal(kw1, (n_embd, hidden), dtype=dtype) * 0.02
        b1 = jax.random.normal(kb1, (hidden,), dtype=dtype) * 0.02
        w2 = jax.random.normal(kw2, (hidden, n_embd), dtype=dtype) * 0.02
        b2 = jax.random.normal(kb2, (n_embd,), dtype=dtype) * 0.02
        return x, w1, b1, w2, b2

    key = jax.random.PRNGKey(0)
    k1, k2, k3 = jax.random.split(key, 3)

    # Test 1: toy shapes matching the module (batch=2, seq=8, n_embd=32), f32.
    # Weights fit VMEM -> resident fast path.
    x, w1, b1, w2, b2 = make_inputs(k1, 2, 8, 32)
    y = jax.block_until_ready(feed_forward(x, w1, b1, w2, b2))
    assert y.shape == x.shape
    assert jnp.allclose(y, ref_ffn(x, w1, b1, w2, b2), atol=1e-4, rtol=1e-4), \
        "mismatch vs reference (test 1, resident path)"

    # Test 2: forces the streamed path (th=128 -> 2 hidden slabs, f32 VMEM
    # accumulator) and exercises ragged-M padding (M = 18 -> padded to 24).
    x, w1, b1, w2, b2 = make_inputs(k2, 2, 9, 64)
    y = jax.block_until_ready(feed_forward(x, w1, b1, w2, b2, th=128))
    assert y.shape == x.shape
    assert jnp.allclose(y, ref_ffn(x, w1, b1, w2, b2), atol=1e-4, rtol=1e-4), \
        "mismatch vs reference (test 2, streamed path)"

    # Test 3: bf16 operands (default path), f32 accumulation inside the kernel.
    x, w1, b1, w2, b2 = make_inputs(k3, 2, 8, 32, dtype=jnp.bfloat16)
    y = jax.block_until_ready(feed_forward(x, w1, b1, w2, b2))
    assert y.shape == x.shape and y.dtype == jnp.bfloat16
    assert jnp.allclose(y.astype(jnp.float32), ref_ffn(x, w1, b1, w2, b2),
                        atol=2e-2, rtol=2e-2), \
        "mismatch vs reference (test 3, bf16)"

    print("KERNEL_OK")
</pallas_src>

<mosaic_0001>
module attributes {stable_mosaic.version = 11 : i64} {
  func.func @_ffn_kernel_resident(%arg0: i32, %arg1: memref<16x32xf32, #tpu.memory_space<vmem>>, %arg2: memref<32x128xf32, #tpu.memory_space<vmem>>, %arg3: memref<1x128xf32, #tpu.memory_space<vmem>>, %arg4: memref<128x32xf32, #tpu.memory_space<vmem>>, %arg5: memref<1x32xf32, #tpu.memory_space<vmem>>, %arg6: memref<16x32xf32, #tpu.memory_space<vmem>>) attributes {dimension_semantics = [#tpu.dimension_semantics<parallel>], iteration_bounds = array<i64: 1>, scalar_prefetch = 0 : i64, scratch_operands = 0 : i64, tpu.core_type = #tpu.core_type<tc>, window_params = [{transform_indices = @transform_0, window_bounds = array<i64: 16, 32>}, {pipeline_mode = #tpu.pipeline_mode<synchronous>, transform_indices = @transform_1, window_bounds = array<i64: 32, 128>}, {pipeline_mode = #tpu.pipeline_mode<synchronous>, transform_indices = @transform_2, window_bounds = array<i64: 1, 128>}, {pipeline_mode = #tpu.pipeline_mode<synchronous>, transform_indices = @transform_3, window_bounds = array<i64: 128, 32>}, {pipeline_mode = #tpu.pipeline_mode<synchronous>, transform_indices = @transform_4, window_bounds = array<i64: 1, 32>}, {transform_indices = @transform_5, window_bounds = array<i64: 16, 32>}]} {
    %c0 = arith.constant 0 : index
    %c0_0 = arith.constant 0 : index
    %0 = vector.load %arg1[%c0, %c0_0] : memref<16x32xf32, #tpu.memory_space<vmem>>, vector<16x32xf32>
    %c0_1 = arith.constant 0 : index
    %c0_2 = arith.constant 0 : index
    %1 = vector.load %arg2[%c0_1, %c0_2] : memref<32x128xf32, #tpu.memory_space<vmem>>, vector<32x128xf32>
    %cst = arith.constant dense<0.000000e+00> : vector<16x128xf32>
    %2 = tpu.matmul %0, %1, %cst {dimension_numbers = #tpu.dot_dimension_numbers<[1], [0], [0], [1], [0, 0, 1, 1], [], []>} : vector<16x32xf32>, vector<32x128xf32>, vector<16x128xf32> -> vector<16x128xf32>
    %c0_3 = arith.constant 0 : index
    %c0_4 = arith.constant 0 : index
    %3 = vector.load %arg3[%c0_3, %c0_4] : memref<1x128xf32, #tpu.memory_space<vmem>>, vector<1x128xf32>
    %4 = vector.broadcast %3 : vector<1x128xf32> to vector<16x128xf32>
    %5 = arith.addf %2, %4 : vector<16x128xf32>
    %cst_5 = arith.constant 0.000000e+00 : f32
    %6 = vector.broadcast %cst_5 : f32 to vector<16x128xf32>
    %7 = arith.maximumf %5, %6 : vector<16x128xf32>
    %c0_6 = arith.constant 0 : index
    %c0_7 = arith.constant 0 : index
    %8 = vector.load %arg4[%c0_6, %c0_7] : memref<128x32xf32, #tpu.memory_space<vmem>>, vector<128x32xf32>
    %cst_8 = arith.constant dense<0.000000e+00> : vector<16x32xf32>
    %9 = tpu.matmul %7, %8, %cst_8 {dimension_numbers = #tpu.dot_dimension_numbers<[1], [0], [0], [1], [0, 0, 1, 1], [], []>} : vector<16x128xf32>, vector<128x32xf32>, vector<16x32xf32> -> vector<16x32xf32>
    %c0_9 = arith.constant 0 : index
    %c0_10 = arith.constant 0 : index
    %10 = vector.load %arg5[%c0_9, %c0_10] : memref<1x32xf32, #tpu.memory_space<vmem>>, vector<1x32xf32>
    %11 = vector.broadcast %10 : vector<1x32xf32> to vector<16x32xf32>
    %12 = arith.addf %9, %11 : vector<16x32xf32>
    %c0_11 = arith.constant 0 : index
    %c0_12 = arith.constant 0 : index
    %13 = vector.load %arg6[%c0_11, %c0_12] : memref<16x32xf32, #tpu.memory_space<vmem>>, vector<16x32xf32>
    tpu.vector_store %arg6[%c0_11, %c0_12], %12 {strides = array<i32>} : memref<16x32xf32, #tpu.memory_space<vmem>>, vector<16x32xf32>,
    return
  }
  func.func @transform_0(%arg0: i32) -> (i32, i32) {
    %c0_i32 = arith.constant 0 : i32
    %c0_i32_0 = arith.constant 0 : i32
    return %arg0, %c0_i32 : i32, i32
  }
  func.func @transform_1(%arg0: i32) -> (i32, i32) {
    %c0_i32 = arith.constant 0 : i32
    %c0_i32_0 = arith.constant 0 : i32
    %c0_i32_1 = arith.constant 0 : i32
    return %c0_i32, %c0_i32_0 : i32, i32
  }
  func.func @transform_2(%arg0: i32) -> (i32, i32) {
    %c0_i32 = arith.constant 0 : i32
    %c0_i32_0 = arith.constant 0 : i32
    %c0_i32_1 = arith.constant 0 : i32
    return %c0_i32, %c0_i32_0 : i32, i32
  }
  func.func @transform_3(%arg0: i32) -> (i32, i32) {
    %c0_i32 = arith.constant 0 : i32
    %c0_i32_0 = arith.constant 0 : i32
    %c0_i32_1 = arith.constant 0 : i32
    return %c0_i32, %c0_i32_0 : i32, i32
  }
  func.func @transform_4(%arg0: i32) -> (i32, i32) {
    %c0_i32 = arith.constant 0 : i32
    %c0_i32_0 = arith.constant 0 : i32
    %c0_i32_1 = arith.constant 0 : i32
    return %c0_i32, %c0_i32_0 : i32, i32
  }
  func.func @transform_5(%arg0: i32) -> (i32, i32) {
    %c0_i32 = arith.constant 0 : i32
    %c0_i32_0 = arith.constant 0 : i32
    return %arg0, %c0_i32 : i32, i32
  }
}

</mosaic_0001>

<llo_original>
// kernel: tpu_custom_call.1
$region0: #{tpu_custom_call.1}
  #allocation0 [shape = 'u32[]', space=smem, size = 0x4, offset = 0x4, fixed_abs, tag = 'smem constant byte address 0x4 - core index']
  #allocation1 [shape = 'u32[144,128]{1,0:T(1,128)}', space=vmem, size = 0x12000, scoped, tag = 'internal scratch']
  %s0 = inlined_call_operand.hbm [shape: f32[16,32], index: 0, kind: input, shape index: {}]
  %s1 = inlined_call_operand.hbm [shape: f32[32,128], index: 1, kind: input, shape index: {}]
  %s2 = inlined_call_operand.hbm [shape: f32[1,128], index: 2, kind: input, shape index: {}]
  %s3 = inlined_call_operand.hbm [shape: f32[128,32], index: 3, kind: input, shape index: {}]
  %s4 = inlined_call_operand.hbm [shape: f32[1,32], index: 4, kind: input, shape index: {}]
  %s5 = inlined_call_operand.hbm [shape: f32[16,32], index: 5, kind: output, shape index: {}]
  %s6 = sld [smem:[#allocation0]]
  $region50: #{tpu_custom_call.1} parent=0
    _
  %s8 = ssub.s32 1, %s6
  %s9 = scalar_select 0, %s8, %s6
  $region1: #{tpu_custom_call.1} parent=0
    #allocation2 [shape = 'u8[8192]{0}', space=vmem, size = 0x2000, scoped, tag = 'input window, operand 0, single buffered']
    #allocation3 [shape = 's32[1]{0}', space=sflag, size = 0x4, scoped, tag = 'scoped memory for tpu_custom_call.1']
    #allocation4 [shape = 's32[1]{0}', space=sflag, size = 0x4, scoped, tag = 'scoped memory for tpu_custom_call.1']
    #allocation5 [shape = 'u8[16384]{0}', space=vmem, size = 0x4000, scoped, tag = 'input window, operand 1, single buffered']
    #allocation6 [shape = 's32[1]{0}', space=sflag, size = 0x4, scoped, tag = 'scoped memory for tpu_custom_call.1']
    #allocation7 [shape = 'u8[512]{0}', space=vmem, size = 0x400, scoped, tag = 'input window, operand 2, single buffered']
    #allocation8 [shape = 'u8[65536]{0}', space=vmem, size = 0x10000, scoped, tag = 'input window, operand 3, single buffered']
    #allocation9 [shape = 's32[1]{0}', space=sflag, size = 0x4, scoped, tag = 'scoped memory for tpu_custom_call.1']
    #allocation10 [shape = 'u8[512]{0}', space=vmem, size = 0x400, scoped, tag = 'input window, operand 4, single buffered']
    #allocation11 [shape = 'u8[8192]{0}', space=vmem, size = 0x2000, scoped, tag = 'output window, operand 0, single buffered']
    %10 = vsyncpa [#allocation3], 0
    %11 = vsyncpa [#allocation6], 0
    %12 = vsyncpa [#allocation9], 0
    %13 = vsyncpa [#allocation4], 0
    // Predicated region
    $region2: #{tpu_custom_call.1} parent=1 // pred_check
      _
    $region3: #{tpu_custom_call.1} parent=1 // pred_check_branch
      %15 = sbr.rel (0) target = $region5
    $region4: #{tpu_custom_call.1} parent=1 // pred_region
      %s17 = ssub.s32 256, 256
      %18 = vsyncadd [#allocation3], %s17
      %s19 = sshll.u32 [#allocation2], 4
      %s20 = int_to_ptr.vmem [resolvable:$true] %s19
      %25 = dma.hbm_to_vmem [thread:$0]  %s0, 256, %s20, [#allocation3], 128, 128, 8
    $region5: #{tpu_custom_call.1} parent=1 // pred_fallthru
      _
    // Predicated region
    $region6: #{tpu_custom_call.1} parent=1 // pred_check
      _
    $region7: #{tpu_custom_call.1} parent=1 // pred_check_branch
      %27 = sbr.rel (0) target = $region9
    $region8: #{tpu_custom_call.1} parent=1 // pred_region
      %s29 = ssub.s32 512, 512
      %30 = vsyncadd [#allocation6], %s29
      %s31 = sshll.u32 [#allocation5], 4
      %s32 = int_to_ptr.vmem [resolvable:$true] %s31
      %37 = dma.hbm_to_vmem [thread:$0]  %s1, 512, %s32, [#allocation6], 128, 128, 8
    $region9: #{tpu_custom_call.1} parent=1 // pred_fallthru
      _
    // Predicated region
    $region10: #{tpu_custom_call.1} parent=1 // pred_check
      _
    $region11: #{tpu_custom_call.1} parent=1 // pred_check_branch
      %39 = sbr.rel (0) target = $region13
    $region12: #{tpu_custom_call.1} parent=1 // pred_region
      %s41 = ssub.s32 16, 16
      %42 = vsyncadd [#allocation6], %s41
      %s44 = sshll.u32 [#allocation7], 4
      %s45 = int_to_ptr.vmem [resolvable:$true] %s44
      %47 = dma.hbm_to_vmem [thread:$0]  %s2, 16, %s45, [#allocation6]
    $region13: #{tpu_custom_call.1} parent=1 // pred_fallthru
      _
    // Predicated region
    $region14: #{tpu_custom_call.1} parent=1 // pred_check
      _
    $region15: #{tpu_custom_call.1} parent=1 // pred_check_branch
      %49 = sbr.rel (0) target = $region17
    $region16: #{tpu_custom_call.1} parent=1 // pred_region
      %s51 = ssub.s32 2048, 2048
      %52 = vsyncadd [#allocation9], %s51
      %s53 = sshll.u32 [#allocation8], 4
      %s54 = int_to_ptr.vmem [resolvable:$true] %s53
      %59 = dma.hbm_to_vmem [thread:$0]  %s3, 2048, %s54, [#allocation9], 128, 128, 8
    $region17: #{tpu_custom_call.1} parent=1 // pred_fallthru
      _
    // Predicated region
    $region18: #{tpu_custom_call.1} parent=1 // pred_check
      _
    $region19: #{tpu_custom_call.1} parent=1 // pred_check_branch
      %61 = sbr.rel (0) target = $region21
    $region20: #{tpu_custom_call.1} parent=1 // pred_region
      %s63 = ssub.s32 16, 16
      %64 = vsyncadd [#allocation9], %s63
      %s66 = sshll.u32 [#allocation10], 4
      %s67 = int_to_ptr.vmem [resolvable:$true] %s66
      %69 = dma.hbm_to_vmem [thread:$0]  %s4, 16, %s67, [#allocation9]
    $region21: #{tpu_custom_call.1} parent=1 // pred_fallthru
      _
    // Predicated region
    $region22: #{tpu_custom_call.1} parent=1 // pred_check
      _
    $region23: #{tpu_custom_call.1} parent=1 // pred_check_branch
      %71 = sbr.rel (0) target = $region25
    $region24: #{tpu_custom_call.1} parent=1 // pred_region
      %72 = dma.done [#allocation3], 256
    $region25: #{tpu_custom_call.1} parent=1 // pred_fallthru
      _
    // Predicated region
    $region26: #{tpu_custom_call.1} parent=1 // pred_check
      _
    $region27: #{tpu_custom_call.1} parent=1 // pred_check_branch
      %74 = sbr.rel (0) target = $region29
    $region28: #{tpu_custom_call.1} parent=1 // pred_region
      %75 = dma.done [#allocation6], 512
    $region29: #{tpu_custom_call.1} parent=1 // pred_fallthru
      _
    // Predicated region
    $region30: #{tpu_custom_call.1} parent=1 // pred_check
      _
    $region31: #{tpu_custom_call.1} parent=1 // pred_check_branch
      %77 = sbr.rel (0) target = $region33
    $region32: #{tpu_custom_call.1} parent=1 // pred_region
      %78 = dma.done [#allocation6], 16
    $region33: #{tpu_custom_call.1} parent=1 // pred_fallthru
      _
    // Predicated region
    $region34: #{tpu_custom_call.1} parent=1 // pred_check
      _
    $region35: #{tpu_custom_call.1} parent=1 // pred_check_branch
      %80 = sbr.rel (0) target = $region37
    $region36: #{tpu_custom_call.1} parent=1 // pred_region
      %81 = dma.done [#allocation9], 2048
    $region37: #{tpu_custom_call.1} parent=1 // pred_fallthru
      _
    // Predicated region
    $region38: #{tpu_custom_call.1} parent=1 // pred_check
      _
    $region39: #{tpu_custom_call.1} parent=1 // pred_check_branch
      %83 = sbr.rel (0) target = $region41
    $region40: #{tpu_custom_call.1} parent=1 // pred_region
      %84 = dma.done [#allocation9], 16
    $region41: #{tpu_custom_call.1} parent=1 // pred_fallthru
      _
    %v85 = vld [vmem:[#allocation2] sm:$0xff]
    %v86 = vld [vmem:[#allocation2 + $0x8] sm:$0xff]
    %v87 = vld [vmem:[#allocation5] sm:$0xff]
    %v88 = vld [vmem:[#allocation5 + $0x8] sm:$0xff]
    %v89 = vld [vmem:[#allocation5 + $0x10] sm:$0xff]
    %v90 = vld [vmem:[#allocation5 + $0x18] sm:$0xff]
    %v91 = vld [vmem:[#allocation7] sm:$0x1]
    %v93 = vlaneseq
    %v94 = vshrl.u32 %v93, 7
    %v95 = vsub.s32 0, %v94
    %v96 = vrot.slane %v91, %v95
    %vm98 = vcmask 261120
    %v100 = vsel %vm98, %v85, 0
    %v103 = vsel %vm98, %v86, 0
    %105 = vmatprep.subr.mxu0 0.0
    %106 = vmatpush1.msra.mxu0 %v87
    %107 = vmatprep.subr.mxu0 0.0
    %108 = vmatpush1.msra.mxu0 %v88
    %109 = vmatprep.subr.mxu0 0.0
    %110 = vmatpush1.msra.mxu0 %v89
    %111 = vmatprep.subr.mxu0 0.0
    %112 = vmatpush1.msra.mxu0 %v90
    %113 = vmatprep.subr.mxu0 0.0
    %114 = vmatpush1.msra.mxu0 0.0
    %115 = vmatprep.subr.mxu0 0.0
    %116 = vmatpush1.msra.mxu0 0.0
    %117 = vmatprep.subr.mxu0 0.0
    %118 = vmatpush1.msra.mxu0 0.0
    %119 = vmatprep.subr.mxu0 0.0
    %120 = vmatpush1.msra.mxu0 0.0
    %121 = vmatprep.subr.mxu0 0.0
    %122 = vmatpush1.msra.mxu0 0.0
    %123 = vmatprep.subr.mxu0 0.0
    %124 = vmatpush1.msra.mxu0 0.0
    %125 = vmatprep.subr.mxu0 0.0
    %126 = vmatpush1.msra.mxu0 0.0
    %127 = vmatprep.subr.mxu0 0.0
    %128 = vmatpush1.msra.mxu0 0.0
    %129 = vmatprep.subr.mxu0 0.0
    %130 = vmatpush1.msra.mxu0 0.0
    %131 = vmatprep.subr.mxu0 0.0
    %132 = vmatpush1.msra.mxu0 0.0
    %133 = vmatprep.subr.mxu0 0.0
    %134 = vmatpush1.msra.mxu0 0.0
    %135 = vmatprep.subr.mxu0 0.0
    %136 = vmatpush1.msra.mxu0 0.0
    %137 = vmatprep.subr.mxu0 0.0
    %138 = vmatpush1.msra.mxu0 0.0
    %139 = vmatprep.subr.mxu0 0.0
    %140 = vmatpush1.msra.mxu0 0.0
    %141 = vmatprep.subr.mxu0 0.0
    %142 = vmatpush1.msra.mxu0 0.0
    %143 = vmatprep.subr.mxu0 0.0
    %144 = vmatpush1.msra.mxu0 0.0
    %145 = vmatprep.subr.mxu0 0.0
    %146 = vmatpush1.msra.mxu0 0.0
    %147 = vmatprep.subr.mxu0 0.0
    %148 = vmatpush1.msra.mxu0 0.0
    %149 = vmatprep.subr.mxu0 0.0
    %150 = vmatpush1.msra.mxu0 0.0
    %151 = vmatprep.subr.mxu0 0.0
    %152 = vmatpush1.msra.mxu0 0.0
    %153 = vmatprep.subr.mxu0 0.0
    %154 = vmatpush1.msra.mxu0 0.0
    %155 = vmatprep.subr.mxu0 0.0
    %156 = vmatpush1.msra.mxu0 0.0
    %157 = vmatprep.subr.mxu0 0.0
    %158 = vmatpush1.msra.mxu0 0.0
    %159 = vmatprep.subr.mxu0 0.0
    %160 = vmatpush1.msra.mxu0 0.0
    %161 = vmatprep.subr.mxu0 0.0
    %162 = vmatpush1.msra.mxu0 0.0
    %163 = vmatprep.subr.mxu0 0.0
    %164 = vmatpush1.msra.mxu0 0.0
    %165 = vmatprep.subr.mxu0 0.0
    %166 = vmatpush1.msra.mxu0 0.0
    %167 = vmatprep.subr.mxu0 0.0
    %168 = vmatpush1.msra.mxu0 0.0
    %169 = vmatprep.mubr.f32.mxu0 0.0
    %170 = vmatmul.mubr.f32.gmra.mrb[0].mxu0 %v100
    %v171 = vpop.f32.mrb[0].mxu0
    %v172 = vadd.f32 %v96, %v171
    %v173 = vpop.f32.mrb[0].mxu0
    %174 = vmatprep.mubr.f32.mxu0 0.0
    %175 = vmatmul.mubr.f32.gmra.mrb[0].mxu0 %v103
    %v176 = vpop.f32.mrb[0].mxu0
    %v177 = vadd.f32 %v96, %v176
    %v178 = vpop.f32.mrb[0].mxu0
    %179 = vdwg.mxu0
    %v180 = vmax.f32 %v172, 0.0
    %v181 = vmax.f32 %v177, 0.0
    %v182 = vld [vmem:[#allocation8] sm:$0xff]
    %v183 = vld [vmem:[#allocation8 + $0x8] sm:$0xff]
    %v184 = vld [vmem:[#allocation8 + $0x10] sm:$0xff]
    %v185 = vld [vmem:[#allocation8 + $0x18] sm:$0xff]
    %v186 = vld [vmem:[#allocation8 + $0x20] sm:$0xff]
    %v187 = vld [vmem:[#allocation8 + $0x28] sm:$0xff]
    %v188 = vld [vmem:[#allocation8 + $0x30] sm:$0xff]
    %v189 = vld [vmem:[#allocation8 + $0x38] sm:$0xff]
    %v190 = vld [vmem:[#allocation8 + $0x40] sm:$0xff]
    %v191 = vld [vmem:[#allocation8 + $0x48] sm:$0xff]
    %v192 = vld [vmem:[#allocation8 + $0x50] sm:$0xff]
    %v193 = vld [vmem:[#allocation8 + $0x58] sm:$0xff]
    %v194 = vld [vmem:[#allocation8 + $0x60] sm:$0xff]
    %v195 = vld [vmem:[#allocation8 + $0x68] sm:$0xff]
    %v196 = vld [vmem:[#allocation8 + $0x70] sm:$0xff]
    %v197 = vld [vmem:[#allocation8 + $0x78] sm:$0xff]
    %v198 = vld [vmem:[#allocation10] sm:$0x1]
    %v200 = vlaneseq
    %v201 = vshrl.u32 %v200, 7
    %v202 = vsub.s32 0, %v201
    %v203 = vrot.slane %v198, %v202
    %205 = vmatprep.subr.mxu0 0.0
    %206 = vmatpush1.msra.mxu0 %v182
    %207 = vmatprep.subr.mxu0 0.0
    %208 = vmatpush1.msra.mxu0 %v183
    %209 = vmatprep.subr.mxu0 0.0
    %210 = vmatpush1.msra.mxu0 %v184
    %211 = vmatprep.subr.mxu0 0.0
    %212 = vmatpush1.msra.mxu0 %v185
    %213 = vmatprep.subr.mxu0 0.0
    %214 = vmatpush1.msra.mxu0 %v186
    %215 = vmatprep.subr.mxu0 0.0
    %216 = vmatpush1.msra.mxu0 %v187
    %217 = vmatprep.subr.mxu0 0.0
    %218 = vmatpush1.msra.mxu0 %v188
    %219 = vmatprep.subr.mxu0 0.0
    %220 = vmatpush1.msra.mxu0 %v189
    %221 = vmatprep.subr.mxu0 0.0
    %222 = vmatpush1.msra.mxu0 %v190
    %223 = vmatprep.subr.mxu0 0.0
    %224 = vmatpush1.msra.mxu0 %v191
    %225 = vmatprep.subr.mxu0 0.0
    %226 = vmatpush1.msra.mxu0 %v192
    %227 = vmatprep.subr.mxu0 0.0
    %228 = vmatpush1.msra.mxu0 %v193
    %229 = vmatprep.subr.mxu0 0.0
    %230 = vmatpush1.msra.mxu0 %v194
    %231 = vmatprep.subr.mxu0 0.0
    %232 = vmatpush1.msra.mxu0 %v195
    %233 = vmatprep.subr.mxu0 0.0
    %234 = vmatpush1.msra.mxu0 %v196
    %235 = vmatprep.subr.mxu0 0.0
    %236 = vmatpush1.msra.mxu0 %v197
    %237 = vmatprep.subr.mxu0 0.0
    %238 = vmatpush1.msra.mxu0 0.0
    %239 = vmatprep.subr.mxu0 0.0
    %240 = vmatpush1.msra.mxu0 0.0
    %241 = vmatprep.subr.mxu0 0.0
    %242 = vmatpush1.msra.mxu0 0.0
    %243 = vmatprep.subr.mxu0 0.0
    %244 = vmatpush1.msra.mxu0 0.0
    %245 = vmatprep.subr.mxu0 0.0
    %246 = vmatpush1.msra.mxu0 0.0
    %247 = vmatprep.subr.mxu0 0.0
    %248 = vmatpush1.msra.mxu0 0.0
    %249 = vmatprep.subr.mxu0 0.0
    %250 = vmatpush1.msra.mxu0 0.0
    %251 = vmatprep.subr.mxu0 0.0
    %252 = vmatpush1.msra.mxu0 0.0
    %253 = vmatprep.subr.mxu0 0.0
    %254 = vmatpush1.msra.mxu0 0.0
    %255 = vmatprep.subr.mxu0 0.0
    %256 = vmatpush1.msra.mxu0 0.0
    %257 = vmatprep.subr.mxu0 0.0
    %258 = vmatpush1.msra.mxu0 0.0
    %259 = vmatprep.subr.mxu0 0.0
    %260 = vmatpush1.msra.mxu0 0.0
    %261 = vmatprep.subr.mxu0 0.0
    %262 = vmatpush1.msra.mxu0 0.0
    %263 = vmatprep.subr.mxu0 0.0
    %264 = vmatpush1.msra.mxu0 0.0
    %265 = vmatprep.subr.mxu0 0.0
    %266 = vmatpush1.msra.mxu0 0.0
    %267 = vmatprep.subr.mxu0 0.0
    %268 = vmatpush1.msra.mxu0 0.0
    %269 = vmatprep.mubr.f32.mxu0 0.0
    %270 = vmatmul.mubr.f32.gmra.mrb[0].mxu0 %v180
    %v271 = vpop.f32.mrb[0].mxu0
    %v272 = vadd.f32 %v203, %v271
    %v273 = vpop.f32.mrb[0].mxu0
    %274 = vmatprep.mubr.f32.mxu0 0.0
    %275 = vmatmul.mubr.f32.gmra.mrb[0].mxu0 %v181
    %v276 = vpop.f32.mrb[0].mxu0
    %v277 = vadd.f32 %v203, %v276
    %v278 = vpop.f32.mrb[0].mxu0
    %279 = vdwg.mxu0
    %280 = vst.msk [vmem:[#allocation11] sm:$0xff] %vm98, %v272
    %281 = vst.msk [vmem:[#allocation11 + $0x8] sm:$0xff] %vm98, %v277
    // Predicated region
    $region42: #{tpu_custom_call.1} parent=1 // pred_check
      _
    $region43: #{tpu_custom_call.1} parent=1 // pred_check_branch
      %283 = sbr.rel (0) target = $region45
    $region44: #{tpu_custom_call.1} parent=1 // pred_region
      %s285 = ssub.s32 256, 256
      %286 = vsyncadd [#allocation4], %s285
      %s287 = sshll.u32 [#allocation11], 4
      %s288 = int_to_ptr.vmem [resolvable:$true] %s287
      %293 = dma.vmem_to_hbm [thread:$0]  %s288, 256, %s5, [#allocation4], 128, 128, 8
    $region45: #{tpu_custom_call.1} parent=1 // pred_fallthru
      _
    // Predicated region
    $region46: #{tpu_custom_call.1} parent=1 // pred_check
      _
    $region47: #{tpu_custom_call.1} parent=1 // pred_check_branch
      %295 = sbr.rel (0) target = $region49
    $region48: #{tpu_custom_call.1} parent=1 // pred_region
      %296 = dma.done [#allocation4], 256
    $region49: #{tpu_custom_call.1} parent=1 // pred_fallthru
      _
    %297 = vsyncpa [#allocation3], 1
    %298 = vsyncpa [#allocation6], 1
    %299 = vsyncpa [#allocation9], 1
    %300 = vsyncpa [#allocation4], 1

</llo_original>
